<compile_context>
chip_gen: v5e
topology: v5e:2x2
jax: 0.10.0
libtpu: 0.0.40
codegen_flags: <defaults>
</compile_context>

<pallas_src>
import functools

import jax
import jax.numpy as jnp
from jax.experimental import pallas as pl
from jax.experimental.pallas import tpu as pltpu


def _vae_kernel(x_ref, w_ref, b_ref, eps_ref, out_ref, kl_ref,
                *, c_out, n_valid, tn, mask_rows):
    """One tile of tn tokens: fused linear, reparameterize, per-tile KL partial."""
    # Single fused matmul on the MXU: (tn, C_in) @ (C_in, 2*C_out) -> f32 acc.
    mulv = jnp.dot(x_ref[...], w_ref[...],
                   preferred_element_type=jnp.float32) + b_ref[...]
    mu = mulv[:, :c_out]                       # (tn, C_out)
    lv = mulv[:, c_out:]                       # (tn, C_out)

    std = jnp.exp(0.5 * lv)                    # single EUP pass
    z = mu + eps_ref[...].astype(jnp.float32) * std

    # Combined lane-wider output slab: [z | mu | log_var].
    out_ref[...] = jnp.concatenate([z, mu, lv], axis=-1).astype(out_ref.dtype)

    # KL partial for this tile (exp(lv) == std*std, no second transcendental).
    kl_elem = 1.0 + lv - mu * mu - std * std
    if mask_rows:
        row = pl.program_id(0) * tn + jax.lax.broadcasted_iota(
            jnp.int32, kl_elem.shape, 0)
        kl_elem = jnp.where(row < n_valid, kl_elem, 0.0)
    partial = -0.5 * jnp.sum(kl_elem)

    # Write the scalar partial into element [0, 0] of this tile's (8, 128) block;
    # the wrapper sums the whole array (zeros elsewhere contribute nothing).
    r = jax.lax.broadcasted_iota(jnp.int32, (8, 128), 0)
    c = jax.lax.broadcasted_iota(jnp.int32, (8, 128), 1)
    kl_ref[0] = jnp.where((r == 0) & (c == 0), partial, 0.0)


@functools.partial(jax.jit, static_argnames=("tn",))
def variational_model_vae_forward(x, w_mu, b_mu, w_var, b_var, eps, *, tn=512):
    """x: [B, S, C_in]; w_*: [C_in, C_out] (pre-transposed); b_*: [C_out]; eps: [B, S, C_out]."""
    B, S, C_in = x.shape
    C_out = w_mu.shape[1]
    N = B * S

    x2 = x.reshape(N, C_in)
    eps2 = eps.reshape(N, C_out)

    # Fuse the two linears: one [C_in, 2*C_out] weight, one [1, 2*C_out] bias.
    w = jnp.concatenate([w_mu, w_var], axis=1)
    b = jnp.concatenate([b_mu, b_var], axis=0).reshape(1, 2 * C_out)

    # Big token tiles (clamped to the problem size, sublane-aligned); pad the
    # token axis if needed and mask padded rows out of the KL sum.
    n_up8 = ((N + 7) // 8) * 8
    tn_eff = max(8, min(tn, n_up8))
    n_pad = ((N + tn_eff - 1) // tn_eff) * tn_eff
    if n_pad != N:
        x2 = jnp.pad(x2, ((0, n_pad - N), (0, 0)))
        eps2 = jnp.pad(eps2, ((0, n_pad - N), (0, 0)))
    num_tiles = n_pad // tn_eff

    kernel = functools.partial(
        _vae_kernel, c_out=C_out, n_valid=N, tn=tn_eff, mask_rows=(n_pad != N))

    out, kl_parts = pl.pallas_call(
        kernel,
        out_shape=(
            jax.ShapeDtypeStruct((n_pad, 3 * C_out), x.dtype),        # [z|mu|lv]
            jax.ShapeDtypeStruct((num_tiles, 8, 128), jnp.float32),   # KL partials
        ),
        grid_spec=pltpu.PrefetchScalarGridSpec(
            num_scalar_prefetch=0,
            grid=(num_tiles,),
            in_specs=[
                pl.BlockSpec((tn_eff, C_in), lambda i: (i, 0)),        # x tile
                pl.BlockSpec((C_in, 2 * C_out), lambda i: (0, 0)),     # fused W
                pl.BlockSpec((1, 2 * C_out), lambda i: (0, 0)),        # fused b
                pl.BlockSpec((tn_eff, C_out), lambda i: (i, 0)),       # eps tile
            ],
            out_specs=[
                pl.BlockSpec((tn_eff, 3 * C_out), lambda i: (i, 0)),
                pl.BlockSpec((1, 8, 128), lambda i: (i, 0, 0)),
            ],
        ),
        compiler_params=pltpu.CompilerParams(
            dimension_semantics=("parallel",),  # disjoint outputs per tile -> can shard across TCs
        ),
    )(x2, w, b, eps2)

    z = out[:N, :C_out].reshape(B, S, C_out)
    mu = out[:N, C_out:2 * C_out].reshape(B, S, C_out)
    log_var = out[:N, 2 * C_out:].reshape(B, S, C_out)
    kl = jnp.sum(kl_parts)
    return z, {"kl_loss": kl, "mu": mu, "log_var": log_var}


def _reference_vae(x, w_mu, b_mu, w_var, b_var, eps):
    mu = jnp.einsum("bsc,cd->bsd", x, w_mu) + b_mu
    lv = jnp.einsum("bsc,cd->bsd", x, w_var) + b_var
    z = mu + eps * jnp.exp(0.5 * lv)
    kl = -0.5 * jnp.sum(1.0 + lv - mu ** 2 - jnp.exp(lv))
    return z, mu, lv, kl


if __name__ == "__main__":
    # Small shapes consistent with the module: x is the encoder output
    # [batch, seq, encoder_out_channels]; Linear maps to decoder_in_channels.
    B, S = 2, 8
    ENC_OUT, DEC_IN = 32, 16

    key = jax.random.PRNGKey(0)
    kx, kwm, kbm, kwv, kbv, keps = jax.random.split(key, 6)

    x = jax.random.normal(kx, (B, S, ENC_OUT), dtype=jnp.float32)

    # Deterministic parameter init (mimicking nn.Linear's uniform fan-in scaling).
    bound = 1.0 / jnp.sqrt(ENC_OUT)
    w_mu = jax.random.uniform(kwm, (ENC_OUT, DEC_IN), minval=-bound, maxval=bound)
    b_mu = jax.random.uniform(kbm, (DEC_IN,), minval=-bound, maxval=bound)
    w_var = jax.random.uniform(kwv, (ENC_OUT, DEC_IN), minval=-bound, maxval=bound)
    b_var = jax.random.uniform(kbv, (DEC_IN,), minval=-bound, maxval=bound)

    # eps ~ N(0, 1), same role as torch.randn_like(std) in reparameterize().
    eps = jax.random.normal(keps, (B, S, DEC_IN), dtype=jnp.float32)

    z, losses = variational_model_vae_forward(x, w_mu, b_mu, w_var, b_var, eps)
    jax.block_until_ready((z, losses))

    # Verify against a plain-JAX reference.
    z_ref, mu_ref, lv_ref, kl_ref = _reference_vae(x, w_mu, b_mu, w_var, b_var, eps)
    assert jnp.allclose(z, z_ref, atol=1e-5, rtol=1e-5)
    assert jnp.allclose(losses["mu"], mu_ref, atol=1e-5, rtol=1e-5)
    assert jnp.allclose(losses["log_var"], lv_ref, atol=1e-5, rtol=1e-5)
    assert jnp.allclose(losses["kl_loss"], kl_ref, atol=1e-4, rtol=1e-5)

    print("KERNEL_OK")
</pallas_src>

<mosaic_0001>
module attributes {stable_mosaic.version = 11 : i64} {
  func.func @_vae_kernel(%arg0: i32, %arg1: memref<16x32xf32, #tpu.memory_space<vmem>>, %arg2: memref<32x32xf32, #tpu.memory_space<vmem>>, %arg3: memref<1x32xf32, #tpu.memory_space<vmem>>, %arg4: memref<16x16xf32, #tpu.memory_space<vmem>>, %arg5: memref<16x48xf32, #tpu.memory_space<vmem>>, %arg6: memref<1x8x128xf32, #tpu.memory_space<vmem>>) attributes {dimension_semantics = [#tpu.dimension_semantics<parallel>], iteration_bounds = array<i64: 1>, scalar_prefetch = 0 : i64, scratch_operands = 0 : i64, tpu.core_type = #tpu.core_type<tc>, window_params = [{transform_indices = @transform_0, window_bounds = array<i64: 16, 32>}, {pipeline_mode = #tpu.pipeline_mode<synchronous>, transform_indices = @transform_1, window_bounds = array<i64: 32, 32>}, {pipeline_mode = #tpu.pipeline_mode<synchronous>, transform_indices = @transform_2, window_bounds = array<i64: 1, 32>}, {transform_indices = @transform_3, window_bounds = array<i64: 16, 16>}, {transform_indices = @transform_4, window_bounds = array<i64: 16, 48>}, {transform_indices = @transform_5, window_bounds = array<i64: 1, 8, 128>}]} {
    %c0 = arith.constant 0 : index
    %c0_0 = arith.constant 0 : index
    %0 = vector.load %arg1[%c0, %c0_0] : memref<16x32xf32, #tpu.memory_space<vmem>>, vector<16x32xf32>
    %c0_1 = arith.constant 0 : index
    %c0_2 = arith.constant 0 : index
    %1 = vector.load %arg2[%c0_1, %c0_2] : memref<32x32xf32, #tpu.memory_space<vmem>>, vector<32x32xf32>
    %cst = arith.constant dense<0.000000e+00> : vector<16x32xf32>
    %2 = tpu.matmul %0, %1, %cst {dimension_numbers = #tpu.dot_dimension_numbers<[1], [0], [0], [1], [0, 0, 1, 1], [], []>} : vector<16x32xf32>, vector<32x32xf32>, vector<16x32xf32> -> vector<16x32xf32>
    %c0_3 = arith.constant 0 : index
    %c0_4 = arith.constant 0 : index
    %3 = vector.load %arg3[%c0_3, %c0_4] : memref<1x32xf32, #tpu.memory_space<vmem>>, vector<1x32xf32>
    %4 = vector.broadcast %3 : vector<1x32xf32> to vector<16x32xf32>
    %5 = arith.addf %2, %4 : vector<16x32xf32>
    %6 = vector.extract_strided_slice %5 {offsets = [0, 0], sizes = [16, 16], strides = [1, 1]} : vector<16x32xf32> to vector<16x16xf32>
    %7 = vector.extract_strided_slice %5 {offsets = [0, 16], sizes = [16, 16], strides = [1, 1]} : vector<16x32xf32> to vector<16x16xf32>
    %cst_5 = arith.constant 5.000000e-01 : f32
    %8 = vector.broadcast %cst_5 : f32 to vector<16x16xf32>
    %9 = arith.mulf %8, %7 : vector<16x16xf32>
    %10 = math.exp %9 : vector<16x16xf32>
    %c0_6 = arith.constant 0 : index
    %c0_7 = arith.constant 0 : index
    %11 = vector.load %arg4[%c0_6, %c0_7] : memref<16x16xf32, #tpu.memory_space<vmem>>, vector<16x16xf32>
    %12 = arith.mulf %11, %10 : vector<16x16xf32>
    %13 = arith.addf %6, %12 : vector<16x16xf32>
    %14 = tpu.concatenate %13, %6, %7 in 1 : vector<16x16xf32>, vector<16x16xf32>, vector<16x16xf32> -> vector<16x48xf32>
    %c0_8 = arith.constant 0 : index
    %c0_9 = arith.constant 0 : index
    %15 = vector.load %arg5[%c0_8, %c0_9] : memref<16x48xf32, #tpu.memory_space<vmem>>, vector<16x48xf32>
    tpu.vector_store %arg5[%c0_8, %c0_9], %14 {strides = array<i32>} : memref<16x48xf32, #tpu.memory_space<vmem>>, vector<16x48xf32>,
    %cst_10 = arith.constant 1.000000e+00 : f32
    %16 = vector.broadcast %cst_10 : f32 to vector<16x16xf32>
    %17 = arith.addf %16, %7 : vector<16x16xf32>
    %18 = arith.mulf %6, %6 : vector<16x16xf32>
    %19 = arith.subf %17, %18 : vector<16x16xf32>
    %20 = arith.mulf %10, %10 : vector<16x16xf32>
    %21 = arith.subf %19, %20 : vector<16x16xf32>
    %22 = vector.shape_cast %21 : vector<16x16xf32> to vector<1x16x16xf32>
    %cst_11 = arith.constant dense<0.000000e+00> : vector<1xf32>
    %23 = vector.multi_reduction <add>, %22, %cst_11 [1, 2] : vector<1x16x16xf32> to vector<1xf32>
    %24 = vector.shape_cast %23 : vector<1xf32> to vector<1x1x1xf32>
    %25 = vector.extract %24[0, 0, 0] : f32 from vector<1x1x1xf32>
    %cst_12 = arith.constant -5.000000e-01 : f32
    %26 = arith.mulf %cst_12, %25 : f32
    %27 = tpu.iota {dimensions = array<i32: 0>} : vector<8x128xi32>
    %28 = tpu.iota {dimensions = array<i32: 1>} : vector<8x128xi32>
    %c0_i32 = arith.constant 0 : i32
    %29 = vector.broadcast %c0_i32 : i32 to vector<8x128xi32>
    %30 = arith.cmpi eq, %27, %29 : vector<8x128xi32>
    %c0_i32_13 = arith.constant 0 : i32
    %31 = vector.broadcast %c0_i32_13 : i32 to vector<8x128xi32>
    %32 = arith.cmpi eq, %28, %31 : vector<8x128xi32>
    %33 = arith.andi %30, %32 : vector<8x128xi1>
    %cst_14 = arith.constant 0.000000e+00 : f32
    %34 = vector.broadcast %26 : f32 to vector<8x128xf32>
    %35 = vector.broadcast %cst_14 : f32 to vector<8x128xf32>
    %36 = arith.select %33, %34, %35 : vector<8x128xi1>, vector<8x128xf32>
    %c0_15 = arith.constant 0 : index
    %c0_16 = arith.constant 0 : index
    %c0_17 = arith.constant 0 : index
    %37 = vector.load %arg6[%c0_15, %c0_16, %c0_17] : memref<1x8x128xf32, #tpu.memory_space<vmem>>, vector<1x8x128xf32>
    %38 = vector.shape_cast %37 : vector<1x8x128xf32> to vector<8x128xf32>
    %39 = vector.shape_cast %36 : vector<8x128xf32> to vector<1x8x128xf32>
    tpu.vector_store %arg6[%c0_15, %c0_16, %c0_17], %39 {strides = array<i32>} : memref<1x8x128xf32, #tpu.memory_space<vmem>>, vector<1x8x128xf32>,
    return
  }
  func.func @transform_0(%arg0: i32) -> (i32, i32) {
    %c0_i32 = arith.constant 0 : i32
    %c0_i32_0 = arith.constant 0 : i32
    return %arg0, %c0_i32 : i32, i32
  }
  func.func @transform_1(%arg0: i32) -> (i32, i32) {
    %c0_i32 = arith.constant 0 : i32
    %c0_i32_0 = arith.constant 0 : i32
    %c0_i32_1 = arith.constant 0 : i32
    return %c0_i32, %c0_i32_0 : i32, i32
  }
  func.func @transform_2(%arg0: i32) -> (i32, i32) {
    %c0_i32 = arith.constant 0 : i32
    %c0_i32_0 = arith.constant 0 : i32
    %c0_i32_1 = arith.constant 0 : i32
    return %c0_i32, %c0_i32_0 : i32, i32
  }
  func.func @transform_3(%arg0: i32) -> (i32, i32) {
    %c0_i32 = arith.constant 0 : i32
    %c0_i32_0 = arith.constant 0 : i32
    return %arg0, %c0_i32 : i32, i32
  }
  func.func @transform_4(%arg0: i32) -> (i32, i32) {
    %c0_i32 = arith.constant 0 : i32
    %c0_i32_0 = arith.constant 0 : i32
    return %arg0, %c0_i32 : i32, i32
  }
  func.func @transform_5(%arg0: i32) -> (i32, i32, i32) {
    %c0_i32 = arith.constant 0 : i32
    %c0_i32_0 = arith.constant 0 : i32
    %c0_i32_1 = arith.constant 0 : i32
    return %arg0, %c0_i32, %c0_i32_0 : i32, i32, i32
  }
}

</mosaic_0001>

<llo_original>
// kernel: variational_model_vae_forward.1
$region0: #{variational_model_vae_forward.1}
  #allocation0 [shape = 'u32[]', space=smem, size = 0x4, offset = 0x4, fixed_abs, tag = 'smem constant byte address 0x4 - core index']
  #allocation1 [shape = 'u32[72,128]{1,0:T(1,128)}', space=vmem, size = 0x9000, scoped, tag = 'internal scratch']
  %s0 = inlined_call_operand.vmem [shape: f32[16,32], index: 0, kind: input, shape index: {}]
  %s1 = inlined_call_operand.vmem [shape: f32[32,32], index: 1, kind: input, shape index: {}]
  %s2 = inlined_call_operand.vmem [shape: f32[1,32], index: 2, kind: input, shape index: {}]
  %s3 = inlined_call_operand.vmem [shape: f32[16,16], index: 3, kind: input, shape index: {}]
  %s4 = inlined_call_operand.vmem [shape: f32[16,48], index: 4, kind: output, shape index: {0}]
  %s5 = inlined_call_operand.vmem [shape: f32[1,8,128], index: 5, kind: output, shape index: {1}]
  %6 = xla_tuple %s4, %s5
  %s7 = sld [smem:[#allocation0]]
  $region34: #{variational_model_vae_forward.1} parent=0
    _
  %s9 = ssub.s32 1, %s7
  %s10 = scalar_select 0, %s9, %s7
  // Predicated region
  $region2: #{variational_model_vae_forward.1} parent=0 // pred_check
    _
  $region3: #{variational_model_vae_forward.1} parent=0 // pred_check_branch
    %12 = sbr.rel (0) target = $region5
  $region4: #{variational_model_vae_forward.1} parent=0 // pred_region
    _
  $region5: #{variational_model_vae_forward.1} parent=0 // pred_fallthru
    _
  // Predicated region
  $region6: #{variational_model_vae_forward.1} parent=0 // pred_check
    _
  $region7: #{variational_model_vae_forward.1} parent=0 // pred_check_branch
    %14 = sbr.rel (0) target = $region9
  $region8: #{variational_model_vae_forward.1} parent=0 // pred_region
    _
  $region9: #{variational_model_vae_forward.1} parent=0 // pred_fallthru
    _
  // Predicated region
  $region10: #{variational_model_vae_forward.1} parent=0 // pred_check
    _
  $region11: #{variational_model_vae_forward.1} parent=0 // pred_check_branch
    %16 = sbr.rel (0) target = $region13
  $region12: #{variational_model_vae_forward.1} parent=0 // pred_region
    _
  $region13: #{variational_model_vae_forward.1} parent=0 // pred_fallthru
    _
  // Predicated region
  $region14: #{variational_model_vae_forward.1} parent=0 // pred_check
    _
  $region15: #{variational_model_vae_forward.1} parent=0 // pred_check_branch
    %18 = sbr.rel (0) target = $region17
  $region16: #{variational_model_vae_forward.1} parent=0 // pred_region
    _
  $region17: #{variational_model_vae_forward.1} parent=0 // pred_fallthru
    _
  %v19 = vld [vmem:[%s0] sm:$0xff]
  %v20 = vld [vmem:[%s0 + $0x8] sm:$0xff]
  %v21 = vld [vmem:[%s1] sm:$0xff]
  %v22 = vld [vmem:[%s1 + $0x8] sm:$0xff]
  %v23 = vld [vmem:[%s1 + $0x10] sm:$0xff]
  %v24 = vld [vmem:[%s1 + $0x18] sm:$0xff]
  %v25 = vld [vmem:[%s2] sm:$0x1]
  %v27 = vperm.slane %v25, 0
  %vm29 = vcmask 261120
  %v31 = vsel %vm29, %v19, 0
  %v34 = vsel %vm29, %v20, 0
  %36 = vmatpush.msra.mxu0 0.0
  %37 = vmatpush.msra.mxu0 0.0
  %38 = vmatpush.msra.mxu0 0.0
  %39 = vmatpush.msra.mxu0 0.0
  %40 = vmatpush.msra.mxu0 0.0
  %41 = vmatpush.msra.mxu0 0.0
  %42 = vmatpush.msra.mxu0 0.0
  %43 = vmatpush.msra.mxu0 0.0
  %44 = vmatpush.msra.mxu0 0.0
  %45 = vmatpush.msra.mxu0 0.0
  %46 = vmatpush.msra.mxu0 0.0
  %47 = vmatpush.msra.mxu0 0.0
  %48 = vmatpush.msra.mxu0 %v24
  %49 = vmatpush.msra.mxu0 %v23
  %50 = vmatpush.msra.mxu0 %v22
  %51 = vmatpush.msra.mxu0 %v21
  %52 = vmatmul.f32.gmra.mxu0 %v31
  %v53 = vpop.f32.mrf.mxu0
  %v54 = vadd.f32 %v27, %v53
  %55 = vmatmul.f32.gmra.mxu0 %v34
  %v56 = vpop.f32.mrf.mxu0
  %v57 = vadd.f32 %v27, %v56
  %58 = vdwg.mxu0
  %v59 = vmul.f32 %v54, 0.5
  %v60 = vmul.f32 %v57, 0.5
  %v61 = vmul.f32 %v59, 1.442695
  %v62 = vpow.pop %v61
  %v63 = vmul.f32 %v60, 1.442695
  %v64 = vpow.pop %v63
  %v65 = vld [vmem:[%s3] sm:$0xff]
  %v66 = vld [vmem:[%s3 + $0x8] sm:$0xff]
  %69 = vrot.lane.b32.xlu0 %v62, 112
  %v70 = vpop.permute.xlu0 %69
  %71 = vrot.lane.b32.xlu0 %v64, 112
  %v72 = vpop.permute.xlu0 %71
  %v75 = vmul.f32 %v65, %v70
  %v76 = vmul.f32 %v66, %v72
  %v77 = vadd.f32 %v54, %v75
  %v78 = vadd.f32 %v57, %v76
  %81 = vrot.lane.b32.xlu0 %v54, 16
  %v82 = vpop.permute.xlu0 %81
  %83 = vrot.lane.b32.xlu0 %v57, 16
  %v84 = vpop.permute.xlu0 %83
  %vm87 = vcmask 130048
  %v88 = vsel %vm87, %v77, %v82
  %v89 = vsel %vm87, %v78, %v84
  %v90 = vsel %vm29, %v88, %v82
  %v91 = vsel %vm29, %v89, %v84
  %vm92 = vcmask 392192
  %93 = vst.msk [vmem:[%s4] sm:$0xff] %vm92, %v90
  %94 = vst.msk [vmem:[%s4 + $0x8] sm:$0xff] %vm92, %v91
  %v95 = vadd.f32 %v54, 1.0
  %v96 = vadd.f32 %v57, 1.0
  %v97 = vmul.f32 %v54, %v54
  %v98 = vmul.f32 %v57, %v57
  %101 = vrot.lane.b32.xlu0 %v97, 16
  %v102 = vpop.permute.xlu0 %101
  %103 = vrot.lane.b32.xlu0 %v98, 16
  %v104 = vpop.permute.xlu0 %103
  %v107 = vsub.f32 %v95, %v102
  %v108 = vsub.f32 %v96, %v104
  %v109 = vmul.f32 %v62, %v62
  %v110 = vmul.f32 %v64, %v64
  %v111 = vsub.f32 %v107, %v109
  %v112 = vsub.f32 %v108, %v110
  %115 = vrot.lane.b32.xlu0 %v111, 112
  %v116 = vpop.permute.xlu0 %115
  %117 = vrot.lane.b32.xlu0 %v112, 112
  %v118 = vpop.permute.xlu0 %117
  %v121 = vsel %vm87, %v116, 0.0
  %v122 = vsel %vm87, %v118, 0.0
  %v123 = vadd.f32 %v121, %v122
  %124 = vadd.xlane.f32.xlu0 %v123
  %v125 = vpop.xlane.xlu0 %124
  %v126 = vrot.slane %v125, 4
  %v127 = vadd.f32 %v125, %v126
  %v128 = vrot.slane %v127, 2
  %v129 = vadd.f32 %v127, %v128
  %v130 = vrot.slane %v129, 1
  %v131 = vadd.f32 %v129, %v130
  %s132 = vtos %v131
  %s133 = smul.f32 %s132, -0.5
  %v134 = vlaneseq
  %v135 = vshrl.u32 %v134, 7
  %v136 = vlaneseq
  %v137 = vand.u32 %v136, 127
  %vm138 = vcmp.eq.s32.totalorder %v135, 0
  %vm139 = vcmp.eq.s32.totalorder %v137, 0
  %vm140 = vmand %vm138, %vm139
  %v141 = vstv %s133
  %v142 = vsel %vm140, %v141, 0.0
  %143 = vst [vmem:[%s5] sm:$0xff] %v142
  // Predicated region
  $region18: #{variational_model_vae_forward.1} parent=0 // pred_check
    _
  $region19: #{variational_model_vae_forward.1} parent=0 // pred_check_branch
    %145 = sbr.rel (0) target = $region21
  $region20: #{variational_model_vae_forward.1} parent=0 // pred_region
    _
  $region21: #{variational_model_vae_forward.1} parent=0 // pred_fallthru
    _
  // Predicated region
  $region22: #{variational_model_vae_forward.1} parent=0 // pred_check
    _
  $region23: #{variational_model_vae_forward.1} parent=0 // pred_check_branch
    %147 = sbr.rel (0) target = $region25
  $region24: #{variational_model_vae_forward.1} parent=0 // pred_region
    _
  $region25: #{variational_model_vae_forward.1} parent=0 // pred_fallthru
    _
  // Predicated region
  $region26: #{variational_model_vae_forward.1} parent=0 // pred_check
    _
  $region27: #{variational_model_vae_forward.1} parent=0 // pred_check_branch
    %149 = sbr.rel (0) target = $region29
  $region28: #{variational_model_vae_forward.1} parent=0 // pred_region
    _
  $region29: #{variational_model_vae_forward.1} parent=0 // pred_fallthru
    _
  // Predicated region
  $region30: #{variational_model_vae_forward.1} parent=0 // pred_check
    _
  $region31: #{variational_model_vae_forward.1} parent=0 // pred_check_branch
    %151 = sbr.rel (0) target = $region33
  $region32: #{variational_model_vae_forward.1} parent=0 // pred_region
    _
  $region33: #{variational_model_vae_forward.1} parent=0 // pred_fallthru
    _

</llo_original>
